<compile_context>
chip_gen: v5e
topology: v5e:2x2
jax: 0.10.0
libtpu: 0.0.40
codegen_flags: <defaults>
</compile_context>

<pallas_src>
import functools
import math

import jax
import jax.numpy as jnp
from jax.experimental import pallas as pl
from jax.experimental.pallas import tpu as pltpu


def _round_up(x, m):
    return ((x + m - 1) // m) * m


# ----------------------------------------------------------------------------
# Pallas kernels
# ----------------------------------------------------------------------------
def _make_mm_kernel(act, has_pre, has_post):
    """o = [post +] act((A @ B) + bias [+ pre]); BN scale pre-folded into B."""

    def kernel(*refs):
        a_ref, b_ref, bias_ref = refs[0], refs[1], refs[2]
        idx = 3
        pre_ref = None
        post_ref = None
        if has_pre:
            pre_ref = refs[idx]
            idx += 1
        if has_post:
            post_ref = refs[idx]
            idx += 1
        o_ref = refs[idx]

        # bf16 operands on the MXU, f32 accumulate; epilogue stays in f32
        # (v5e has no bf16 VPU/EUP), cast only at the store.
        acc = jnp.dot(a_ref[...], b_ref[...],
                      preferred_element_type=jnp.float32)
        y = acc + bias_ref[...]
        if has_pre:
            y = y + pre_ref[...].astype(jnp.float32)
        if act == "relu":
            y = jnp.maximum(y, 0.0)
        elif act == "sigmoid":
            y = jax.nn.sigmoid(y)
        if has_post:
            y = y + post_ref[...].astype(jnp.float32)
        o_ref[...] = y.astype(o_ref.dtype)

    return kernel


def _add_kernel(a_ref, b_ref, o_ref):
    y = a_ref[...].astype(jnp.float32) + b_ref[...].astype(jnp.float32)
    o_ref[...] = y.astype(o_ref.dtype)


# ----------------------------------------------------------------------------
# Fused matmul wrapper (conv / convT contraction + BN + act + residuals)
# ----------------------------------------------------------------------------
@functools.partial(jax.jit, static_argnames=("act", "out_dtype"))
def _fused_matmul(A, B, bias, res_pre, res_post, *, act, out_dtype):
    """out = [res_post +] act(A @ B + bias [+ res_pre]).

    A: (M, K), B: (K, N) (BN scale already folded in), bias: (N,) f32.
    Operands are cast to bf16 for the MXU; accumulation and epilogue in f32.
    """
    M, K = A.shape
    N = B.shape[1]

    # M-tiling: avoid padding tiny decoder / deep-layer M up to 128+.
    if M <= 256:
        TM = _round_up(M, 16)
        Mp = TM
    else:
        TM = 256
        Mp = _round_up(M, TM)
    Kp = _round_up(K, 128)
    Np = _round_up(N, 128)
    # N-tiling gives a second parallel grid axis (both v7x TensorCores busy).
    TN = 256 if Np % 256 == 0 else 128

    Ap = jnp.pad(A.astype(jnp.bfloat16), ((0, Mp - M), (0, Kp - K)))
    Bp = jnp.pad(B.astype(jnp.bfloat16), ((0, Kp - K), (0, Np - N)))
    bp = jnp.pad(bias.astype(jnp.float32), (0, Np - N)).reshape(1, Np)

    inputs = [Ap, Bp, bp]
    in_specs = [
        pl.BlockSpec((TM, Kp), lambda i, j: (i, 0)),
        pl.BlockSpec((Kp, TN), lambda i, j: (0, j)),
        pl.BlockSpec((1, TN), lambda i, j: (0, j)),
    ]
    has_pre = res_pre is not None
    has_post = res_post is not None
    if has_pre:
        rp = jnp.pad(res_pre.astype(jnp.bfloat16),
                     ((0, Mp - M), (0, Np - N)))
        inputs.append(rp)
        in_specs.append(pl.BlockSpec((TM, TN), lambda i, j: (i, j)))
    if has_post:
        rq = jnp.pad(res_post.astype(jnp.bfloat16),
                     ((0, Mp - M), (0, Np - N)))
        inputs.append(rq)
        in_specs.append(pl.BlockSpec((TM, TN), lambda i, j: (i, j)))

    out = pl.pallas_call(
        _make_mm_kernel(act, has_pre, has_post),
        out_shape=jax.ShapeDtypeStruct((Mp, Np), out_dtype),
        grid=(Mp // TM, Np // TN),
        in_specs=in_specs,
        out_specs=pl.BlockSpec((TM, TN), lambda i, j: (i, j)),
        compiler_params=pltpu.CompilerParams(
            dimension_semantics=("parallel", "parallel"),
            # <= 48 MiB so the scoped limit fits v7x's 64 MiB VMEM; actual
            # working set (double-buffered A/B/out tiles) is ~12 MiB max.
            vmem_limit_bytes=48 * 1024 * 1024,
        ),
    )(*inputs)
    return out[:M, :N]


def fused_matmul(A, B, bias, *, act, res_pre=None, res_post=None,
                 out_dtype=jnp.bfloat16):
    return _fused_matmul(A, B, bias, res_pre, res_post,
                         act=act, out_dtype=out_dtype)


@jax.jit
def add_tensors(a, b):
    """Elementwise a + b with a tiled, lane-dense Pallas kernel."""
    shp = a.shape
    C = shp[-1]
    a2 = a.reshape(-1, C)
    b2 = b.reshape(-1, C)
    M = a2.shape[0]
    Cp = _round_up(C, 128)
    if M <= 1024:
        TM = _round_up(M, 16)
        Mp = TM
    else:
        TM = 512
        Mp = _round_up(M, TM)
    a2 = jnp.pad(a2, ((0, Mp - M), (0, Cp - C)))
    b2 = jnp.pad(b2, ((0, Mp - M), (0, Cp - C)))
    out = pl.pallas_call(
        _add_kernel,
        out_shape=jax.ShapeDtypeStruct((Mp, Cp), a.dtype),
        grid=(Mp // TM,),
        in_specs=[pl.BlockSpec((TM, Cp), lambda i: (i, 0)),
                  pl.BlockSpec((TM, Cp), lambda i: (i, 0))],
        out_specs=pl.BlockSpec((TM, Cp), lambda i: (i, 0)),
        compiler_params=pltpu.CompilerParams(
            dimension_semantics=("parallel",)),
    )(a2, b2)
    return out[:M, :C].reshape(shp)


# ----------------------------------------------------------------------------
# Conv / ConvTranspose built on the fused Pallas matmul
# ----------------------------------------------------------------------------
def bn_fold(bn):
    """Fold eval-mode BatchNorm into a per-channel (scale, bias)."""
    scale = bn["gamma"] / jnp.sqrt(bn["var"] + 1e-5)
    bias = bn["beta"] - bn["mean"] * scale
    return scale, bias


def conv_bn_act(x, w, bn, *, stride, pad, act, res_pre=None, res_post=None,
                out_dtype=jnp.bfloat16):
    """x: NHWC (bf16), w: PyTorch layout (Cout, Cin, Kh, Kw), bias-free conv."""
    N, H, W, Cin = x.shape
    Cout, _, Kh, Kw = w.shape
    OH = (H + 2 * pad - Kh) // stride + 1
    OW = (W + 2 * pad - Kw) // stride + 1
    xp = jnp.pad(x, ((0, 0), (pad, pad), (pad, pad), (0, 0)))
    # TODO(synk): im2col patch extraction kept as plain-JAX glue (in bf16); a
    # fully fused in-kernel tap-reduction gather would remove this HBM round
    # trip but is hard to express for the stride-2 layers via BlockSpec alone.
    cols = []
    for kh in range(Kh):
        for kw in range(Kw):
            cols.append(xp[:, kh::stride, kw::stride, :][:, :OH, :OW, :])
    A = jnp.stack(cols, axis=3).reshape(N * OH * OW, Kh * Kw * Cin)
    B = jnp.transpose(w, (2, 3, 1, 0)).reshape(Kh * Kw * Cin, Cout)
    if bn is None:
        scale = jnp.ones((Cout,), jnp.float32)
        bias = jnp.zeros((Cout,), jnp.float32)
    else:
        scale, bias = bn_fold(bn)
    B = B * scale[None, :]  # fold BN scale into the weights at trace time
    rp = None if res_pre is None else res_pre.reshape(N * OH * OW, Cout)
    rq = None if res_post is None else res_post.reshape(N * OH * OW, Cout)
    y = fused_matmul(A, B, bias, act=act, res_pre=rp, res_post=rq,
                     out_dtype=out_dtype)
    return y.reshape(N, OH, OW, Cout)


def convT2x2_bn_relu(x, w, conv_bias, bn):
    """ConvTranspose2d(k=2, s=2) + BN + ReLU.  w: (Cin, Cout, 2, 2)."""
    N, H, W, Cin = x.shape
    Cout = w.shape[1]
    A = x.reshape(N * H * W, Cin)
    B = jnp.transpose(w, (0, 2, 3, 1)).reshape(Cin, 4 * Cout)
    s_bn, b_bn = bn_fold(bn)
    scale = jnp.tile(s_bn, 4)                      # per (a, b, co)
    bias = jnp.tile(conv_bias * s_bn + b_bn, 4)    # conv bias folded through BN
    B = B * scale[None, :]
    y = fused_matmul(A, B, bias, act="relu")
    y = y.reshape(N, H, W, 2, 2, Cout)
    # TODO(synk): depth-to-space kept as XLA transpose glue (bf16); could be
    # emitted directly from the kernel via a strided output index_map.
    y = jnp.transpose(y, (0, 1, 3, 2, 4, 5)).reshape(N, 2 * H, 2 * W, Cout)
    return y


# ----------------------------------------------------------------------------
# Non-matmul glue (plain JAX)
# ----------------------------------------------------------------------------
def maxpool3x3_s2_p1(x):
    # TODO(synk): 3x3/s2 max-pool kept as a small plain-JAX reduction (glue).
    N, H, W, C = x.shape
    OH = (H + 2 - 3) // 2 + 1
    OW = (W + 2 - 3) // 2 + 1
    xp = jnp.pad(x, ((0, 0), (1, 1), (1, 1), (0, 0)),
                 constant_values=-jnp.inf)
    vals = []
    for kh in range(3):
        for kw in range(3):
            vals.append(xp[:, kh::2, kw::2, :][:, :OH, :OW, :])
    return jnp.max(jnp.stack(vals, axis=0), axis=0)


def nearest_resize(x, oh, ow):
    # matches torch.nn.functional.interpolate(mode='nearest')
    N, H, W, C = x.shape
    hi = jnp.floor(jnp.arange(oh) * (H / oh)).astype(jnp.int32)
    wi = jnp.floor(jnp.arange(ow) * (W / ow)).astype(jnp.int32)
    return x[:, hi][:, :, wi]


def center_pad_to(x, ref):
    dh = ref.shape[1] - x.shape[1]
    dw = ref.shape[2] - x.shape[2]
    return jnp.pad(x, ((0, 0), (dh // 2, dh - dh // 2),
                       (dw // 2, dw - dw // 2), (0, 0)))


# ----------------------------------------------------------------------------
# Parameter construction (deterministic, PyTorch-shaped)
# ----------------------------------------------------------------------------
class KeyGen:
    def __init__(self, key):
        self.key = key

    def __call__(self):
        self.key, k = jax.random.split(self.key)
        return k


def build_params(key, *, bottleneck_dim=64, output_channels=1):
    kg = KeyGen(key)

    def cw(cout, cin, kh, kw):
        fan = cin * kh * kw
        return jax.random.normal(kg(), (cout, cin, kh, kw),
                                 jnp.float32) / math.sqrt(fan)

    def bn(c):
        return {"gamma": jnp.ones((c,), jnp.float32),
                "beta": jnp.zeros((c,), jnp.float32),
                "mean": jnp.zeros((c,), jnp.float32),
                "var": jnp.ones((c,), jnp.float32)}

    def bblock(cin, cout, stride):
        p = {"conv1": cw(cout, cin, 3, 3), "bn1": bn(cout),
             "conv2": cw(cout, cout, 3, 3), "bn2": bn(cout),
             "stride": stride}
        if stride != 1 or cin != cout:
            p["ds_w"] = cw(cout, cin, 1, 1)
            p["ds_bn"] = bn(cout)
        return p

    def conv_seq(specs):
        seq = []
        for cin, cout, k, stride, pad, has_bn, act in specs:
            seq.append({"w": cw(cout, cin, k, k),
                        "bn": bn(cout) if has_bn else None,
                        "stride": stride, "pad": pad, "act": act})
        return seq

    def upblock(cin, cmid, cout, last_act):
        return {"tw": jax.random.normal(kg(), (cin, cmid, 2, 2),
                                        jnp.float32) / math.sqrt(4 * cin),
                "tb": 0.01 * jax.random.normal(kg(), (cmid,), jnp.float32),
                "tbn": bn(cmid),
                "cw": cw(cout, cmid, 3, 3),
                "cbn": bn(cout),
                "last_act": last_act}

    params = {
        # ResNet18 stem (block1 = conv1 + bn1 + relu)
        "block1": {"w": cw(64, 3, 7, 7), "bn": bn(64)},
        # ResNet18 layer2 / layer3 / layer4 (block2 skips layer1, as in source)
        "layer2": [bblock(64, 128, 2), bblock(128, 128, 1)],
        "layer3": [bblock(128, 256, 2), bblock(256, 256, 1)],
        "layer4": [bblock(256, 512, 2), bblock(512, 512, 1)],
        "block5": conv_seq([(512, 512, 3, 2, 1, True, "relu")] +
                           [(512, 512, 3, 1, 1, True, "relu")] * 3),
        # depth branch
        "block1_depth": {"w": cw(64, 1, 7, 7), "bn": bn(64)},
        "block2_depth": conv_seq([(64, 128, 3, 2, 1, True, "relu"),
                                  (128, 128, 3, 1, 1, True, "relu")]),
        "block3_depth": conv_seq([(128, 256, 3, 2, 1, True, "relu"),
                                  (256, 256, 3, 1, 1, True, "relu")]),
        "block4_depth": conv_seq([(256, 512, 3, 2, 1, True, "relu"),
                                  (512, 512, 3, 1, 1, True, "relu")]),
        "block5_depth": conv_seq([(512, 512, 3, 2, 1, True, "relu"),
                                  (512, 512, 3, 1, 1, True, "relu")]),
        # bottleneck (conv + relu, no BN)
        "bottleneck": conv_seq([(512, bottleneck_dim, 3, 1, 1, False, "relu"),
                                (bottleneck_dim, 256, 3, 1, 1, False, "relu")]),
        # decoder
        "convTrans1": upblock(512 + 256, 256, 128, "relu"),
        "convTrans2": upblock(512 + 128, 128, 64, "relu"),
        "convTrans3": upblock(256 + 64, 64, 32, "relu"),
        "convTrans4": upblock(128 + 32, 32, 32, "relu"),
        "convTrans5": upblock(64 + 32, 32, output_channels, "sigmoid"),
    }
    return params


# ----------------------------------------------------------------------------
# Forward pass
# ----------------------------------------------------------------------------
def run_conv_seq(x, seq, res_post=None):
    """Apply a conv+BN+act sequence; optionally fuse a post-activation
    residual (depth/rgb branch sum) into the final conv's epilogue."""
    for li, layer in enumerate(seq):
        rp = res_post if li == len(seq) - 1 else None
        x = conv_bn_act(x, layer["w"], layer["bn"],
                        stride=layer["stride"], pad=layer["pad"],
                        act=layer["act"], res_post=rp)
    return x


def basic_block(x, p, res_post=None):
    out = conv_bn_act(x, p["conv1"], p["bn1"], stride=p["stride"], pad=1,
                      act="relu")
    if "ds_w" in p:
        identity = conv_bn_act(x, p["ds_w"], p["ds_bn"], stride=p["stride"],
                               pad=0, act="none")
    else:
        identity = x
    # ResNet identity fused pre-activation; optional branch sum fused
    # post-activation — no separate elementwise kernels / HBM round trips.
    out = conv_bn_act(out, p["conv2"], p["bn2"], stride=1, pad=1, act="relu",
                      res_pre=identity, res_post=res_post)
    return out


def run_layer(x, blocks, res_post=None):
    for bi, blk in enumerate(blocks):
        rp = res_post if bi == len(blocks) - 1 else None
        x = basic_block(x, blk, res_post=rp)
    return x


def run_upblock(x, p):
    x = convT2x2_bn_relu(x, p["tw"], p["tb"], p["tbn"])
    out_dtype = jnp.float32 if p["last_act"] == "sigmoid" else jnp.bfloat16
    x = conv_bn_act(x, p["cw"], p["cbn"], stride=1, pad=1, act=p["last_act"],
                    out_dtype=out_dtype)
    return x


def forward(params, rgb_img, depth_img, out_dim):
    # NCHW -> NHWC, bf16 activations throughout (f32 only for final sigmoid)
    rgb = jnp.transpose(rgb_img, (0, 2, 3, 1)).astype(jnp.bfloat16)
    depth = jnp.transpose(depth_img, (0, 2, 3, 1)).astype(jnp.bfloat16)

    # depth branch stem first so its result can ride the rgb conv epilogue
    out1_depth = conv_bn_act(depth, params["block1_depth"]["w"],
                             params["block1_depth"]["bn"],
                             stride=2, pad=3, act="relu")
    out1 = conv_bn_act(rgb, params["block1"]["w"], params["block1"]["bn"],
                       stride=2, pad=3, act="relu", res_post=out1_depth)

    # block2 = maxpool + resnet layer2; branch sum needs a zero-pad first
    out2_depth = run_conv_seq(out1_depth, params["block2_depth"])
    out2_rgb = maxpool3x3_s2_p1(out1)
    out2_rgb = run_layer(out2_rgb, params["layer2"])
    # mirrors the hard-coded desired_out2: pad out2 on the bottom/right with
    # zeros to out2_depth's spatial shape, then sum the branches.
    ph = out2_depth.shape[1] - out2_rgb.shape[1]
    pw = out2_depth.shape[2] - out2_rgb.shape[2]
    out2_rgb = jnp.pad(out2_rgb, ((0, 0), (0, ph), (0, pw), (0, 0)))
    out2 = add_tensors(out2_rgb, out2_depth)

    out3_depth = run_conv_seq(out2_depth, params["block3_depth"])
    out3 = run_layer(out2, params["layer3"], res_post=out3_depth)

    out4_depth = run_conv_seq(out3_depth, params["block4_depth"])
    out4 = run_layer(out3, params["layer4"], res_post=out4_depth)

    out5_depth = run_conv_seq(out4_depth, params["block5_depth"])
    out5 = run_conv_seq(out4, params["block5"], res_post=out5_depth)

    x = run_conv_seq(out5, params["bottleneck"])
    x = jnp.concatenate([x, out5], axis=-1)

    x = run_upblock(x, params["convTrans1"])
    x = center_pad_to(x, out4)
    x = jnp.concatenate([x, out4], axis=-1)

    x = run_upblock(x, params["convTrans2"])
    x = center_pad_to(x, out3)
    x = jnp.concatenate([x, out3], axis=-1)

    x = run_upblock(x, params["convTrans3"])
    x = jnp.concatenate([x, out2], axis=-1)

    x = run_upblock(x, params["convTrans4"])
    x = jnp.concatenate([x, out1], axis=-1)

    x = run_upblock(x, params["convTrans5"])   # sigmoid, f32 output

    x = nearest_resize(x, out_dim[0], out_dim[1])
    # NHWC -> NCHW to match the PyTorch return layout
    return jnp.transpose(x, (0, 3, 1, 2)).astype(jnp.float32)


# ----------------------------------------------------------------------------
# Main
# ----------------------------------------------------------------------------
if __name__ == "__main__":
    key = jax.random.PRNGKey(0)
    k_rgb, k_depth, k_params = jax.random.split(key, 3)

    # small shapes: batch=2, 64x64 inputs (the module's own arithmetic
    # determines all intermediate channel counts: 64/128/256/512).
    rgb_img = jax.random.normal(k_rgb, (2, 3, 64, 64), jnp.float32)
    depth_img = jax.random.normal(k_depth, (2, 1, 64, 64), jnp.float32)

    # params.output_size = (W_out, H_out) -> out_dim = (H_out, W_out)
    output_size = (48, 32)
    out_dim = (output_size[1], output_size[0])

    params = build_params(k_params, bottleneck_dim=64, output_channels=1)

    out = forward(params, rgb_img, depth_img, out_dim)
    out = jax.block_until_ready(out)

    assert out.shape == (2, 1, out_dim[0], out_dim[1]), out.shape
    assert bool(jnp.all(jnp.isfinite(out)))
    assert bool(jnp.all((out >= 0.0) & (out <= 1.0)))  # final sigmoid
    print("KERNEL_OK")
</pallas_src>

<mosaic_0001>
module attributes {stable_mosaic.version = 11 : i64} {
  func.func @kernel(%arg0: i32, %arg1: i32, %arg2: memref<256x128xbf16, #tpu.memory_space<vmem>>, %arg3: memref<128x128xbf16, #tpu.memory_space<vmem>>, %arg4: memref<1x128xf32, #tpu.memory_space<vmem>>, %arg5: memref<256x128xbf16, #tpu.memory_space<vmem>>) attributes {dimension_semantics = [#tpu.dimension_semantics<parallel>, #tpu.dimension_semantics<parallel>], iteration_bounds = array<i64: 8, 1>, scalar_prefetch = 0 : i64, scratch_operands = 0 : i64, tpu.core_type = #tpu.core_type<tc>, window_params = [{transform_indices = @transform_0, window_bounds = array<i64: 256, 128>}, {transform_indices = @transform_1, window_bounds = array<i64: 128, 128>}, {transform_indices = @transform_2, window_bounds = array<i64: 1, 128>}, {transform_indices = @transform_3, window_bounds = array<i64: 256, 128>}]} {
    %c0 = arith.constant 0 : index
    %c0_0 = arith.constant 0 : index
    %0 = vector.load %arg2[%c0, %c0_0] : memref<256x128xbf16, #tpu.memory_space<vmem>>, vector<256x128xbf16>
    %c0_1 = arith.constant 0 : index
    %c0_2 = arith.constant 0 : index
    %1 = vector.load %arg3[%c0_1, %c0_2] : memref<128x128xbf16, #tpu.memory_space<vmem>>, vector<128x128xbf16>
    %cst = arith.constant dense<0.000000e+00> : vector<256x128xf32>
    %2 = tpu.matmul %0, %1, %cst {dimension_numbers = #tpu.dot_dimension_numbers<[1], [0], [0], [1], [0, 0, 1, 1], [], []>} : vector<256x128xbf16>, vector<128x128xbf16>, vector<256x128xf32> -> vector<256x128xf32>
    %c0_3 = arith.constant 0 : index
    %c0_4 = arith.constant 0 : index
    %3 = vector.load %arg4[%c0_3, %c0_4] : memref<1x128xf32, #tpu.memory_space<vmem>>, vector<1x128xf32>
    %4 = vector.broadcast %3 : vector<1x128xf32> to vector<256x128xf32>
    %5 = arith.addf %2, %4 : vector<256x128xf32>
    %cst_5 = arith.constant 0.000000e+00 : f32
    %6 = vector.broadcast %cst_5 : f32 to vector<256x128xf32>
    %7 = arith.maximumf %5, %6 : vector<256x128xf32>
    %8 = arith.truncf %7 : vector<256x128xf32> to vector<256x128xbf16>
    %c0_6 = arith.constant 0 : index
    %c0_7 = arith.constant 0 : index
    %9 = vector.load %arg5[%c0_6, %c0_7] : memref<256x128xbf16, #tpu.memory_space<vmem>>, vector<256x128xbf16>
    tpu.vector_store %arg5[%c0_6, %c0_7], %8 {strides = array<i32>} : memref<256x128xbf16, #tpu.memory_space<vmem>>, vector<256x128xbf16>,
    return
  }
  func.func @transform_0(%arg0: i32, %arg1: i32) -> (i32, i32) {
    %c0_i32 = arith.constant 0 : i32
    %c0_i32_0 = arith.constant 0 : i32
    return %arg0, %c0_i32 : i32, i32
  }
  func.func @transform_1(%arg0: i32, %arg1: i32) -> (i32, i32) {
    %c0_i32 = arith.constant 0 : i32
    %c0_i32_0 = arith.constant 0 : i32
    return %c0_i32, %arg1 : i32, i32
  }
  func.func @transform_2(%arg0: i32, %arg1: i32) -> (i32, i32) {
    %c0_i32 = arith.constant 0 : i32
    %c0_i32_0 = arith.constant 0 : i32
    return %c0_i32, %arg1 : i32, i32
  }
  func.func @transform_3(%arg0: i32, %arg1: i32) -> (i32, i32) {
    %c0_i32 = arith.constant 0 : i32
    return %arg0, %arg1 : i32, i32
  }
}

</mosaic_0001>

<llo_original>
// kernel: _fused_matmul.1
$region0: #{_fused_matmul.1}
  #allocation0 [shape = 'u32[]', space=smem, size = 0x4, offset = 0x4, fixed_abs, tag = 'smem constant byte address 0x4 - core index']
  #allocation1 [shape = 'u32[72,128]{1,0:T(1,128)}', space=vmem, size = 0x9000, scoped, tag = 'internal scratch']
  %s0 = inlined_call_operand.vmem [shape: bf16[2048,128], index: 0, kind: input, shape index: {}]
  %s1 = inlined_call_operand.vmem [shape: bf16[128,128], index: 1, kind: input, shape index: {}]
  %s2 = inlined_call_operand.vmem [shape: f32[1,128], index: 2, kind: input, shape index: {}]
  %s3 = inlined_call_operand.vmem [shape: bf16[2048,128], index: 3, kind: output, shape index: {}]
  %s4 = sld [smem:[#allocation0]]
  $region45: #{_fused_matmul.1} parent=0
    _
  %s6 = ssub.s32 1, %s4
  %s7 = scalar_select 0, %s6, %s4
  loop: start=0, step=1, limit=10
  $region2: #{_fused_matmul.1} parent=0 // loop_pre_header
    _
  $region3: #{_fused_matmul.1} parent=0 // loop_header
    %s9 = sphi 0, %s13
    %p10 = scmp.ge.s32.totalorder %s9, 10
    %s16 = sphi 0, %s28
    %s17 = sphi 0, %s24
    %s18 = sphi 0, %s16
    %s19 = sphi 0, %s17
    %s20 = sphi 0, %s18
    %s21 = sphi 0, %s19
    %s31 = sphi 0, %s33
    %s34 = sphi 0, %s31
    %s35 = sphi 0, %s34
    %s51 = sphi 0, %s35
    %s57 = sphi 0, %s59
    %s60 = sphi 0, %s57
    %s61 = sphi 0, %s60
    %s77 = sphi 0, %s61
    %s83 = sphi 0, %s85
    %s86 = sphi 0, %s83
    %s87 = sphi 0, %s86
    %s103 = sphi 0, %s87
    %s111 = sphi 0, %s113
    %s114 = sphi 0, %s111
    %s115 = sphi 0, %s114
    %s131 = sphi 0, %s115
  $region4: #{_fused_matmul.1} parent=0 // loop_header_branch
    %12 = sbr.rel (%p10) target = $region8
  $region5: #{_fused_matmul.1} parent=0 // loop_body
    %s14 = ssub.s32 %s9, 1
    %s15 = ssub.s32 %s9, 2
    %s22 = sadd.s32 1, %s17
    %p23 = scmp.ge.s32.totalorder %s22, 1
    %s24 = scalar_select %p23, 0, %s22
    %s25 = sadd.s32 1, %s16
    %s26 = scalar_select %p23, %s25, %s16
    %p27 = scmp.ge.s32.totalorder %s26, 8
    %s28 = scalar_select %p27, 0, %s26
    %s29 = ssub.s32 %s16, %s28
    %p30 = scmp.eq.s32.totalorder %s29, 0
    %s32 = sadd.s32 %s31, 1
    %s33 = scalar_select %p30, %s31, %s32
    %p36 = pneg %p30
    %p37 = scmp.eq.s32.totalorder %s9, 7
    %p38 = por %p36, %p37
    %p39 = scmp.ne.s32.totalorder %s31, %s34
    %p40 = scmp.eq.s32.totalorder %s9, 0
    %p41 = por %p39, %p40
    %p42 = scmp.ne.s32.totalorder %s31, %s34
    %p43 = scmp.eq.s32.totalorder %s14, 7
    %p44 = por %p42, %p43
    %p45 = scmp.ne.s32.totalorder %s34, %s35
    %p46 = scmp.eq.s32.totalorder %s14, 0
    %p47 = por %p45, %p46
    %p48 = scmp.ne.s32.totalorder %s34, %s35
    %p49 = scmp.eq.s32.totalorder %s15, 7
    %p50 = por %p48, %p49
    %p52 = scmp.ne.s32.totalorder %s35, %s51
    %p53 = scmp.eq.s32.totalorder %s15, 0
    %p54 = por %p52, %p53
    %s55 = ssub.s32 %s17, %s24
    %p56 = scmp.eq.s32.totalorder %s55, 0
    %s58 = sadd.s32 %s57, 1
    %s59 = scalar_select %p56, %s57, %s58
    %p62 = pneg %p56
    %p63 = scmp.eq.s32.totalorder %s9, 7
    %p64 = por %p62, %p63
    %p65 = scmp.ne.s32.totalorder %s57, %s60
    %p66 = scmp.eq.s32.totalorder %s9, 0
    %p67 = por %p65, %p66
    %p68 = scmp.ne.s32.totalorder %s57, %s60
    %p69 = scmp.eq.s32.totalorder %s14, 7
    %p70 = por %p68, %p69
    %p71 = scmp.ne.s32.totalorder %s60, %s61
    %p72 = scmp.eq.s32.totalorder %s14, 0
    %p73 = por %p71, %p72
    %p74 = scmp.ne.s32.totalorder %s60, %s61
    %p75 = scmp.eq.s32.totalorder %s15, 7
    %p76 = por %p74, %p75
    %p78 = scmp.ne.s32.totalorder %s61, %s77
    %p79 = scmp.eq.s32.totalorder %s15, 0
    %p80 = por %p78, %p79
    %s81 = ssub.s32 %s17, %s24
    %p82 = scmp.eq.s32.totalorder %s81, 0
    %s84 = sadd.s32 %s83, 1
    %s85 = scalar_select %p82, %s83, %s84
    %p88 = pneg %p82
    %p89 = scmp.eq.s32.totalorder %s9, 7
    %p90 = por %p88, %p89
    %p91 = scmp.ne.s32.totalorder %s83, %s86
    %p92 = scmp.eq.s32.totalorder %s9, 0
    %p93 = por %p91, %p92
    %p94 = scmp.ne.s32.totalorder %s83, %s86
    %p95 = scmp.eq.s32.totalorder %s14, 7
    %p96 = por %p94, %p95
    %p97 = scmp.ne.s32.totalorder %s86, %s87
    %p98 = scmp.eq.s32.totalorder %s14, 0
    %p99 = por %p97, %p98
    %p100 = scmp.ne.s32.totalorder %s86, %s87
    %p101 = scmp.eq.s32.totalorder %s15, 7
    %p102 = por %p100, %p101
    %p104 = scmp.ne.s32.totalorder %s87, %s103
    %p105 = scmp.eq.s32.totalorder %s15, 0
    %p106 = por %p104, %p105
    %s107 = ssub.s32 %s16, %s28
    %s108 = ssub.s32 %s17, %s24
    %s109 = sor.u32 %s107, %s108
    %p110 = scmp.eq.s32.totalorder %s109, 0
    %s112 = sadd.s32 %s111, 1
    %s113 = scalar_select %p110, %s111, %s112
    %p116 = pneg %p110
    %p117 = scmp.eq.s32.totalorder %s9, 7
    %p118 = por %p116, %p117
    %p119 = scmp.ne.s32.totalorder %s111, %s114
    %p120 = scmp.eq.s32.totalorder %s9, 0
    %p121 = por %p119, %p120
    %p122 = scmp.ne.s32.totalorder %s111, %s114
    %p123 = scmp.eq.s32.totalorder %s14, 7
    %p124 = por %p122, %p123
    %p125 = scmp.ne.s32.totalorder %s114, %s115
    %p126 = scmp.eq.s32.totalorder %s14, 0
    %p127 = por %p125, %p126
    %p128 = scmp.ne.s32.totalorder %s114, %s115
    %p129 = scmp.eq.s32.totalorder %s15, 7
    %p130 = por %p128, %p129
    %p132 = scmp.ne.s32.totalorder %s115, %s131
    %p133 = scmp.eq.s32.totalorder %s15, 0
    %p134 = por %p132, %p133
    %p135 = scmp.le.s32.totalorder 1, %s9
    %p136 = scmp.lt.s32.totalorder %s9, 9
    %p137 = pnand %p135, %p136
    %p138 = pneg %p137
    // Predicated region
    $region9: #{_fused_matmul.1} parent=5 // pred_check
      _
    $region10: #{_fused_matmul.1} parent=5 // pred_check_branch
      %140 = sbr.rel (%p137) target = $region12
    $region11: #{_fused_matmul.1} parent=5 // pred_region
      %s141 = ssub.s32 %s9, 1
      // Predicated region
      $region13: #{_fused_matmul.1} parent=11 // pred_check
        %p142 = pneg %p73
      $region14: #{_fused_matmul.1} parent=11 // pred_check_branch
        %144 = sbr.rel (%p142) target = $region16
      $region15: #{_fused_matmul.1} parent=11 // pred_region
        %p145 = scmp.lt.s32.totalorder %s19, 0
        %s146 = scalar_select %p145, %s19, 0
        %s147 = smul.addr %s146, 4
        %s148 = scalar_lea.vmem %s1, %s147
      $region16: #{_fused_matmul.1} parent=11 // pred_fallthru
        _
      // Predicated region
      $region17: #{_fused_matmul.1} parent=11 // pred_check
        %p149 = pneg %p99
      $region18: #{_fused_matmul.1} parent=11 // pred_check_branch
        %151 = sbr.rel (%p149) target = $region20
      $region19: #{_fused_matmul.1} parent=11 // pred_region
        %p152 = scmp.lt.s32.totalorder %s19, 0
        %s153 = scalar_select %p152, %s19, 0
        %s154 = scalar_lea.vmem %s2, %s153
      $region20: #{_fused_matmul.1} parent=11 // pred_fallthru
        _
    $region12: #{_fused_matmul.1} parent=5 // pred_fallthru
      _
    %p155 = scmp.lt.s32.totalorder %s9, 8
    // Predicated region
    $region21: #{_fused_matmul.1} parent=5 // pred_check
      %p156 = pneg %p155
    $region22: #{_fused_matmul.1} parent=5 // pred_check_branch
      %158 = sbr.rel (%p156) target = $region24
    $region23: #{_fused_matmul.1} parent=5 // pred_region
      // Predicated region
      $region25: #{_fused_matmul.1} parent=23 // pred_check
        %p159 = pneg %p41
      $region26: #{_fused_matmul.1} parent=23 // pred_check_branch
        %161 = sbr.rel (%p159) target = $region28
      $region27: #{_fused_matmul.1} parent=23 // pred_region
        %s162 = smul.u32 32, %s16
        %p163 = scmp.lt.s32.totalorder %s162, 255
        %s164 = scalar_select %p163, %s162, 255
        %s165 = smul.addr %s164, 4
        %s166 = scalar_lea.vmem %s0, %s165
        %s167 = smul.u32 32, %s16
      $region28: #{_fused_matmul.1} parent=23 // pred_fallthru
        _
    $region24: #{_fused_matmul.1} parent=5 // pred_fallthru
      _
    %p168 = scmp.le.s32.totalorder 1, %s9
    %p169 = scmp.lt.s32.totalorder %s9, 9
    %p170 = pnand %p168, %p169
    %p171 = pneg %p170
    // Predicated region
    $region29: #{_fused_matmul.1} parent=5 // pred_check
      _
    $region30: #{_fused_matmul.1} parent=5 // pred_check_branch
      %173 = sbr.rel (%p170) target = $region32
    $region31: #{_fused_matmul.1} parent=5 // pred_region
      %s174 = ssub.s32 %s9, 1
      %s175 = smul.u32 32, %s18
      %p176 = scmp.lt.s32.totalorder %s175, 255
      %s177 = scalar_select %p176, %s175, 255
      %s178 = smul.addr %s177, 4
      %s179 = scalar_lea.vmem %s0, %s178
      %p180 = pneg %p47
      %p181 = pneg %p44
      %p182 = scmp.lt.s32.totalorder %s19, 0
      %s183 = scalar_select %p182, %s19, 0
      %s184 = smul.addr %s183, 4
      %s185 = scalar_lea.vmem %s1, %s184
      %p186 = pneg %p73
      %p187 = pneg %p70
      %p188 = scmp.lt.s32.totalorder %s19, 0
      %s189 = scalar_select %p188, %s19, 0
      %s190 = scalar_lea.vmem %s2, %s189
      %p191 = pneg %p99
      %p192 = pneg %p96
      %p193 = pneg %p127
      %p194 = pneg %p124
      %s195 = smul.u32 32, %s18
      %p196 = scmp.lt.s32.totalorder %s195, 255
      %s197 = scalar_select %p196, %s195, 255
      %p198 = scmp.lt.s32.totalorder %s19, 0
      %s199 = scalar_select %p198, %s19, 0
      %s200 = sadd.s32 %s199, %s197
      %s201 = smul.addr %s200, 4
      %s202 = scalar_lea.vmem %s3, %s201
      %s203 = smul.u32 32, %s18
      %p204 = scmp.lt.s32.totalorder %s203, 255
      %s205 = scalar_select %p204, %s203, 255
      %s206 = smul.addr %s205, 4
      %s207 = scalar_lea.vmem %s0, %s206
      %s208 = smul.u32 32, %s18
      %p209 = scmp.lt.s32.totalorder %s19, 0
      %s210 = scalar_select %p209, %s19, 0
      %s211 = smul.addr %s210, 4
      %s212 = scalar_lea.vmem %s1, %s211
      %p213 = scmp.lt.s32.totalorder %s19, 0
      %s214 = scalar_select %p213, %s19, 0
      %s215 = scalar_lea.vmem %s2, %s214
      %s216 = smul.u32 32, %s18
      %p217 = scmp.lt.s32.totalorder %s216, 255
      %s218 = scalar_select %p217, %s216, 255
      %p219 = scmp.lt.s32.totalorder %s19, 0
      %s220 = scalar_select %p219, %s19, 0
      %s221 = sadd.s32 %s220, %s218
      %s222 = smul.addr %s221, 4
      %s223 = scalar_lea.vmem %s3, %s222
      %s224 = smul.u32 32, %s18
      %v225 = vld [vmem:[%s207] sm:$0xf]
      %v226 = vld [vmem:[%s207 + $0x4] sm:$0xf]
      %v227 = vld [vmem:[%s207 + $0x8] sm:$0xf]
      %v228 = vld [vmem:[%s207 + $0xc] sm:$0xf]
      %v229 = vld [vmem:[%s207 + $0x10] sm:$0xf]
      %v230 = vld [vmem:[%s207 + $0x14] sm:$0xf]
      %v231 = vld [vmem:[%s207 + $0x18] sm:$0xf]
      %v232 = vld [vmem:[%s207 + $0x1c] sm:$0xf]
      %v233 = vld [vmem:[%s207 + $0x20] sm:$0xf]
      %v234 = vld [vmem:[%s207 + $0x24] sm:$0xf]
      %v235 = vld [vmem:[%s207 + $0x28] sm:$0xf]
      %v236 = vld [vmem:[%s207 + $0x2c] sm:$0xf]
      %v237 = vld [vmem:[%s207 + $0x30] sm:$0xf]
      %v238 = vld [vmem:[%s207 + $0x34] sm:$0xf]
      %v239 = vld [vmem:[%s207 + $0x38] sm:$0xf]
      %v240 = vld [vmem:[%s207 + $0x3c] sm:$0xf]
      %v241 = vld [vmem:[%s207 + $0x40] sm:$0xf]
      %v242 = vld [vmem:[%s207 + $0x44] sm:$0xf]
      %v243 = vld [vmem:[%s207 + $0x48] sm:$0xf]
      %v244 = vld [vmem:[%s207 + $0x4c] sm:$0xf]
      %v245 = vld [vmem:[%s207 + $0x50] sm:$0xf]
      %v246 = vld [vmem:[%s207 + $0x54] sm:$0xf]
      %v247 = vld [vmem:[%s207 + $0x58] sm:$0xf]
      %v248 = vld [vmem:[%s207 + $0x5c] sm:$0xf]
      %v249 = vld [vmem:[%s207 + $0x60] sm:$0xf]
      %v250 = vld [vmem:[%s207 + $0x64] sm:$0xf]
      %v251 = vld [vmem:[%s207 + $0x68] sm:$0xf]
      %v252 = vld [vmem:[%s207 + $0x6c] sm:$0xf]
      %v253 = vld [vmem:[%s207 + $0x70] sm:$0xf]
      %v254 = vld [vmem:[%s207 + $0x74] sm:$0xf]
      %v255 = vld [vmem:[%s207 + $0x78] sm:$0xf]
      %v256 = vld [vmem:[%s207 + $0x7c] sm:$0xf]
      %v257 = vld [vmem:[%s212] sm:$0xf]
      %v258 = vld [vmem:[%s212 + $0x4] sm:$0xf]
      %v259 = vld [vmem:[%s212 + $0x8] sm:$0xf]
      %v260 = vld [vmem:[%s212 + $0xc] sm:$0xf]
      %v261 = vld [vmem:[%s212 + $0x10] sm:$0xf]
      %v262 = vld [vmem:[%s212 + $0x14] sm:$0xf]
      %v263 = vld [vmem:[%s212 + $0x18] sm:$0xf]
      %v264 = vld [vmem:[%s212 + $0x1c] sm:$0xf]
      %v265 = vld [vmem:[%s212 + $0x20] sm:$0xf]
      %v266 = vld [vmem:[%s212 + $0x24] sm:$0xf]
      %v267 = vld [vmem:[%s212 + $0x28] sm:$0xf]
      %v268 = vld [vmem:[%s212 + $0x2c] sm:$0xf]
      %v269 = vld [vmem:[%s212 + $0x30] sm:$0xf]
      %v270 = vld [vmem:[%s212 + $0x34] sm:$0xf]
      %v271 = vld [vmem:[%s212 + $0x38] sm:$0xf]
      %v272 = vld [vmem:[%s212 + $0x3c] sm:$0xf]
      %v273 = vld [vmem:[%s215] sm:$0x1]
      %v275 = vperm.slane %v273, 0
      %v309 = vunpack.c.l.b16 %v225
      %v310 = vunpack.c.l.b16 %v226
      %v311 = vunpack.c.l.b16 %v227
      %v312 = vunpack.c.l.b16 %v228
      %v313 = vunpack.c.l.b16 %v229
      %v314 = vunpack.c.l.b16 %v230
      %v315 = vunpack.c.l.b16 %v231
      %v316 = vunpack.c.l.b16 %v232
      %v317 = vunpack.c.l.b16 %v233
      %v318 = vunpack.c.l.b16 %v234
      %v319 = vunpack.c.l.b16 %v235
      %v320 = vunpack.c.l.b16 %v236
      %v321 = vunpack.c.l.b16 %v237
      %v322 = vunpack.c.l.b16 %v238
      %v323 = vunpack.c.l.b16 %v239
      %v324 = vunpack.c.l.b16 %v240
      %v325 = vunpack.c.l.b16 %v241
      %v326 = vunpack.c.l.b16 %v242
      %v327 = vunpack.c.l.b16 %v243
      %v328 = vunpack.c.l.b16 %v244
      %v329 = vunpack.c.l.b16 %v245
      %v330 = vunpack.c.l.b16 %v246
      %v331 = vunpack.c.l.b16 %v247
      %v332 = vunpack.c.l.b16 %v248
      %v333 = vunpack.c.l.b16 %v249
      %v334 = vunpack.c.l.b16 %v250
      %v335 = vunpack.c.l.b16 %v251
      %v336 = vunpack.c.l.b16 %v252
      %v337 = vunpack.c.l.b16 %v253
      %v338 = vunpack.c.l.b16 %v254
      %v339 = vunpack.c.l.b16 %v255
      %v340 = vunpack.c.l.b16 %v256
      %v341 = vpack.c.b16 %v310, %v309
      %v342 = vpack.c.b16 %v312, %v311
      %v343 = vpack.c.b16 %v314, %v313
      %v344 = vpack.c.b16 %v316, %v315
      %v345 = vpack.c.b16 %v318, %v317
      %v346 = vpack.c.b16 %v320, %v319
      %v347 = vpack.c.b16 %v322, %v321
      %v348 = vpack.c.b16 %v324, %v323
      %v349 = vpack.c.b16 %v326, %v325
      %v350 = vpack.c.b16 %v328, %v327
      %v351 = vpack.c.b16 %v330, %v329
      %v352 = vpack.c.b16 %v332, %v331
      %v353 = vpack.c.b16 %v334, %v333
      %v354 = vpack.c.b16 %v336, %v335
      %v355 = vpack.c.b16 %v338, %v337
      %v356 = vpack.c.b16 %v340, %v339
      %v389 = vunpack.c.l.b16 %v257
      %v390 = vunpack.c.l.b16 %v258
      %v391 = vunpack.c.l.b16 %v259
      %v392 = vunpack.c.l.b16 %v260
      %v393 = vunpack.c.l.b16 %v261
      %v394 = vunpack.c.l.b16 %v262
      %v395 = vunpack.c.l.b16 %v263
      %v396 = vunpack.c.l.b16 %v264
      %v397 = vunpack.c.l.b16 %v265
      %v398 = vunpack.c.l.b16 %v266
      %v399 = vunpack.c.l.b16 %v267
      %v400 = vunpack.c.l.b16 %v268
      %v401 = vunpack.c.l.b16 %v269
      %v402 = vunpack.c.l.b16 %v270
      %v403 = vunpack.c.l.b16 %v271
      %v404 = vunpack.c.l.b16 %v272
      %v405 = vpack.c.b16 %v390, %v389
      %v406 = vpack.c.b16 %v392, %v391
      %v407 = vpack.c.b16 %v394, %v393
      %v408 = vpack.c.b16 %v396, %v395
      %v409 = vpack.c.b16 %v398, %v397
      %v410 = vpack.c.b16 %v400, %v399
      %v411 = vpack.c.b16 %v402, %v401
      %v412 = vpack.c.b16 %v404, %v403
      %421 = vmatpush.bf16.msra.mxu0 %v412
      %422 = vmatpush.bf16.msra.mxu0 %v411
      %423 = vmatpush.bf16.msra.mxu0 %v410
      %424 = vmatpush.bf16.msra.mxu0 %v409
      %425 = vmatpush.bf16.msra.mxu0 %v408
      %426 = vmatpush.bf16.msra.mxu0 %v407
      %427 = vmatpush.bf16.msra.mxu0 %v406
      %428 = vmatpush.bf16.msra.mxu0 %v405
      %429 = vmatmul.bf16.gmra.mxu0 %v341
      %v430 = vpop.f32.mrf.mxu0
      %v431 = vadd.f32 %v275, %v430
      %v432 = vpop.f32.mrf.mxu0
      %v433 = vadd.f32 %v275, %v432
      %434 = vmatmul.bf16.gmra.mxu0 %v342
      %v435 = vpop.f32.mrf.mxu0
      %v436 = vadd.f32 %v275, %v435
      %v437 = vpop.f32.mrf.mxu0
      %v438 = vadd.f32 %v275, %v437
      %439 = vmatmul.bf16.gmra.mxu0 %v343
      %v440 = vpop.f32.mrf.mxu0
      %v441 = vadd.f32 %v275, %v440
      %v442 = vpop.f32.mrf.mxu0
      %v443 = vadd.f32 %v275, %v442
      %444 = vmatmul.bf16.gmra.mxu0 %v344
      %v445 = vpop.f32.mrf.mxu0
      %v446 = vadd.f32 %v275, %v445
      %v447 = vpop.f32.mrf.mxu0
      %v448 = vadd.f32 %v275, %v447
      %449 = vmatmul.bf16.gmra.mxu0 %v345
      %v450 = vpop.f32.mrf.mxu0
      %v451 = vadd.f32 %v275, %v450
      %v452 = vpop.f32.mrf.mxu0
      %v453 = vadd.f32 %v275, %v452
      %454 = vmatmul.bf16.gmra.mxu0 %v346
      %v455 = vpop.f32.mrf.mxu0
      %v456 = vadd.f32 %v275, %v455
      %v457 = vpop.f32.mrf.mxu0
      %v458 = vadd.f32 %v275, %v457
      %459 = vmatmul.bf16.gmra.mxu0 %v347
      %v460 = vpop.f32.mrf.mxu0
      %v461 = vadd.f32 %v275, %v460
      %v462 = vpop.f32.mrf.mxu0
      %v463 = vadd.f32 %v275, %v462
      %464 = vmatmul.bf16.gmra.mxu0 %v348
      %v465 = vpop.f32.mrf.mxu0
      %v466 = vadd.f32 %v275, %v465
      %v467 = vpop.f32.mrf.mxu0
      %v468 = vadd.f32 %v275, %v467
      %469 = vmatmul.bf16.gmra.mxu0 %v349
      %v470 = vpop.f32.mrf.mxu0
      %v471 = vadd.f32 %v275, %v470
      %v472 = vpop.f32.mrf.mxu0
      %v473 = vadd.f32 %v275, %v472
      %474 = vmatmul.bf16.gmra.mxu0 %v350
      %v475 = vpop.f32.mrf.mxu0
      %v476 = vadd.f32 %v275, %v475
      %v477 = vpop.f32.mrf.mxu0
      %v478 = vadd.f32 %v275, %v477
      %479 = vmatmul.bf16.gmra.mxu0 %v351
      %v480 = vpop.f32.mrf.mxu0
      %v481 = vadd.f32 %v275, %v480
      %v482 = vpop.f32.mrf.mxu0
      %v483 = vadd.f32 %v275, %v482
      %484 = vmatmul.bf16.gmra.mxu0 %v352
      %v485 = vpop.f32.mrf.mxu0
      %v486 = vadd.f32 %v275, %v485
      %v487 = vpop.f32.mrf.mxu0
      %v488 = vadd.f32 %v275, %v487
      %489 = vmatmul.bf16.gmra.mxu0 %v353
      %v490 = vpop.f32.mrf.mxu0
      %v491 = vadd.f32 %v275, %v490
      %v492 = vpop.f32.mrf.mxu0
      %v493 = vadd.f32 %v275, %v492
      %494 = vmatmul.bf16.gmra.mxu0 %v354
      %v495 = vpop.f32.mrf.mxu0
      %v496 = vadd.f32 %v275, %v495
      %v497 = vpop.f32.mrf.mxu0
      %v498 = vadd.f32 %v275, %v497
      %499 = vmatmul.bf16.gmra.mxu0 %v355
      %v500 = vpop.f32.mrf.mxu0
      %v501 = vadd.f32 %v275, %v500
      %v502 = vpop.f32.mrf.mxu0
      %v503 = vadd.f32 %v275, %v502
      %504 = vmatmul.bf16.gmra.mxu0 %v356
      %v505 = vpop.f32.mrf.mxu0
      %v506 = vadd.f32 %v275, %v505
      %v507 = vpop.f32.mrf.mxu0
      %v508 = vadd.f32 %v275, %v507
      %509 = vdwg.mxu0
      %v510 = vmax.f32 %v431, 0.0
      %v511 = vmax.f32 %v433, 0.0
      %v512 = vmax.f32 %v436, 0.0
      %v513 = vmax.f32 %v438, 0.0
      %v514 = vmax.f32 %v441, 0.0
      %v515 = vmax.f32 %v443, 0.0
      %v516 = vmax.f32 %v446, 0.0
      %v517 = vmax.f32 %v448, 0.0
      %v518 = vmax.f32 %v451, 0.0
      %v519 = vmax.f32 %v453, 0.0
      %v520 = vmax.f32 %v456, 0.0
      %v521 = vmax.f32 %v458, 0.0
      %v522 = vmax.f32 %v461, 0.0
      %v523 = vmax.f32 %v463, 0.0
      %v524 = vmax.f32 %v466, 0.0
      %v525 = vmax.f32 %v468, 0.0
      %v526 = vmax.f32 %v471, 0.0
      %v527 = vmax.f32 %v473, 0.0
      %v528 = vmax.f32 %v476, 0.0
      %v529 = vmax.f32 %v478, 0.0
      %v530 = vmax.f32 %v481, 0.0
      %v531 = vmax.f32 %v483, 0.0
      %v532 = vmax.f32 %v486, 0.0
      %v533 = vmax.f32 %v488, 0.0
      %v534 = vmax.f32 %v491, 0.0
      %v535 = vmax.f32 %v493, 0.0
      %v536 = vmax.f32 %v496, 0.0
      %v537 = vmax.f32 %v498, 0.0
      %v538 = vmax.f32 %v501, 0.0
      %v539 = vmax.f32 %v503, 0.0
      %v540 = vmax.f32 %v506, 0.0
      %v541 = vmax.f32 %v508, 0.0
      %v542 = vpack.c.bf16 %v510, %v510
      %v543 = vpack.c.bf16 %v511, %v511
      %v544 = vpack.c.bf16 %v512, %v512
      %v545 = vpack.c.bf16 %v513, %v513
      %v546 = vpack.c.bf16 %v514, %v514
      %v547 = vpack.c.bf16 %v515, %v515
      %v548 = vpack.c.bf16 %v516, %v516
      %v549 = vpack.c.bf16 %v517, %v517
      %v550 = vpack.c.bf16 %v518, %v518
      %v551 = vpack.c.bf16 %v519, %v519
      %v552 = vpack.c.bf16 %v520, %v520
      %v553 = vpack.c.bf16 %v521, %v521
      %v554 = vpack.c.bf16 %v522, %v522
      %v555 = vpack.c.bf16 %v523, %v523
      %v556 = vpack.c.bf16 %v524, %v524
      %v557 = vpack.c.bf16 %v525, %v525
      %v558 = vpack.c.bf16 %v526, %v526
      %v559 = vpack.c.bf16 %v527, %v527
      %v560 = vpack.c.bf16 %v528, %v528
      %v561 = vpack.c.bf16 %v529, %v529
      %v562 = vpack.c.bf16 %v530, %v530
      %v563 = vpack.c.bf16 %v531, %v531
      %v564 = vpack.c.bf16 %v532, %v532
      %v565 = vpack.c.bf16 %v533, %v533
      %v566 = vpack.c.bf16 %v534, %v534
      %v567 = vpack.c.bf16 %v535, %v535
      %v568 = vpack.c.bf16 %v536, %v536
      %v569 = vpack.c.bf16 %v537, %v537
      %v570 = vpack.c.bf16 %v538, %v538
      %v571 = vpack.c.bf16 %v539, %v539
      %v572 = vpack.c.bf16 %v540, %v540
      %v573 = vpack.c.bf16 %v541, %v541
      %574 = vst [vmem:[%s223] sm:$0xf] %v542
      %575 = vst [vmem:[%s223 + $0x4] sm:$0xf] %v543
      %576 = vst [vmem:[%s223 + $0x8] sm:$0xf] %v544
      %577 = vst [vmem:[%s223 + $0xc] sm:$0xf] %v545
      %578 = vst [vmem:[%s223 + $0x10] sm:$0xf] %v546
      %579 = vst [vmem:[%s223 + $0x14] sm:$0xf] %v547
      %580 = vst [vmem:[%s223 + $0x18] sm:$0xf] %v548
      %581 = vst [vmem:[%s223 + $0x1c] sm:$0xf] %v549
      %582 = vst [vmem:[%s223 + $0x20] sm:$0xf] %v550
      %583 = vst [vmem:[%s223 + $0x24] sm:$0xf] %v551
      %584 = vst [vmem:[%s223 + $0x28] sm:$0xf] %v552
      %585 = vst [vmem:[%s223 + $0x2c] sm:$0xf] %v553
      %586 = vst [vmem:[%s223 + $0x30] sm:$0xf] %v554
      %587 = vst [vmem:[%s223 + $0x34] sm:$0xf] %v555
      %588 = vst [vmem:[%s223 + $0x38] sm:$0xf] %v556
      %589 = vst [vmem:[%s223 + $0x3c] sm:$0xf] %v557
      %590 = vst [vmem:[%s223 + $0x40] sm:$0xf] %v558
      %591 = vst [vmem:[%s223 + $0x44] sm:$0xf] %v559
      %592 = vst [vmem:[%s223 + $0x48] sm:$0xf] %v560
      %593 = vst [vmem:[%s223 + $0x4c] sm:$0xf] %v561
      %594 = vst [vmem:[%s223 + $0x50] sm:$0xf] %v562
      %595 = vst [vmem:[%s223 + $0x54] sm:$0xf] %v563
      %596 = vst [vmem:[%s223 + $0x58] sm:$0xf] %v564
      %597 = vst [vmem:[%s223 + $0x5c] sm:$0xf] %v565
      %598 = vst [vmem:[%s223 + $0x60] sm:$0xf] %v566
      %599 = vst [vmem:[%s223 + $0x64] sm:$0xf] %v567
      %600 = vst [vmem:[%s223 + $0x68] sm:$0xf] %v568
      %601 = vst [vmem:[%s223 + $0x6c] sm:$0xf] %v569
      %602 = vst [vmem:[%s223 + $0x70] sm:$0xf] %v570
      %603 = vst [vmem:[%s223 + $0x74] sm:$0xf] %v571
      %604 = vst [vmem:[%s223 + $0x78] sm:$0xf] %v572
      %605 = vst [vmem:[%s223 + $0x7c] sm:$0xf] %v573
      %s606 = smul.u32 32, %s18
      %p607 = scmp.lt.s32.totalorder %s606, 255
      %s608 = scalar_select %p607, %s606, 255
      %p609 = scmp.lt.s32.totalorder %s19, 0
      %s610 = scalar_select %p609, %s19, 0
      %s611 = sadd.s32 %s610, %s608
      %s612 = smul.addr %s611, 4
      %s613 = scalar_lea.vmem %s3, %s612
      // Predicated region
      $region33: #{_fused_matmul.1} parent=31 // pred_check
        %p614 = pneg %p124
      $region34: #{_fused_matmul.1} parent=31 // pred_check_branch
        %616 = sbr.rel (%p614) target = $region36
      $region35: #{_fused_matmul.1} parent=31 // pred_region
        %s617 = smul.u32 32, %s18
      $region36: #{_fused_matmul.1} parent=31 // pred_fallthru
        _
    $region32: #{_fused_matmul.1} parent=5 // pred_fallthru
      _
    %p618 = scmp.le.s32.totalorder 2, %s9
    // Predicated region
    $region37: #{_fused_matmul.1} parent=5 // pred_check
      %p619 = pneg %p618
    $region38: #{_fused_matmul.1} parent=5 // pred_check_branch
      %621 = sbr.rel (%p619) target = $region40
    $region39: #{_fused_matmul.1} parent=5 // pred_region
      %s622 = ssub.s32 %s9, 2
      // Predicated region
      $region41: #{_fused_matmul.1} parent=39 // pred_check
        %p623 = pneg %p130
      $region42: #{_fused_matmul.1} parent=39 // pred_check_branch
        %625 = sbr.rel (%p623) target = $region44
      $region43: #{_fused_matmul.1} parent=39 // pred_region
        %s626 = smul.u32 32, %s20
        %p627 = scmp.lt.s32.totalorder %s626, 255
        %s628 = scalar_select %p627, %s626, 255
        %p629 = scmp.lt.s32.totalorder %s21, 0
        %s630 = scalar_select %p629, %s21, 0
        %s631 = sadd.s32 %s630, %s628
        %s632 = smul.addr %s631, 4
        %s633 = scalar_lea.vmem %s3, %s632
      $region44: #{_fused_matmul.1} parent=39 // pred_fallthru
        _
    $region40: #{_fused_matmul.1} parent=5 // pred_fallthru
      _
  $region6: #{_fused_matmul.1} parent=0 // loop_footer
    %s13 = sadd.s32 1, %s9
  $region7: #{_fused_matmul.1} parent=0 // loop_footer_branch
    %8 = sbr.rel target = $region3
  $region8: #{_fused_matmul.1} parent=0 // loop_exit
    _

</llo_original>
